<compile_context>
chip_gen: v5e
topology: v5e:2x2
jax: 0.10.0
libtpu: 0.0.40
codegen_flags: <defaults>
</compile_context>

<pallas_src>
import functools

import jax
import jax.numpy as jnp
from jax import lax
from jax.experimental import pallas as pl
from jax.experimental.pallas import tpu as pltpu

_LANE = 128


def _sdpa_kernel(q_ref, k_ref, v_ref, out_ref, attn_ref, logattn_ref,
                 *, inv_temperature, num_valid_k):
    # Tiles: q (TB, TQ, D), k (TB, Lk_p, D), v (TB, Lk_p, Dv).
    q = q_ref[...]
    k = k_ref[...]
    v = v_ref[...]

    # Fold 1/temperature into q: O(TQ*D) multiply instead of an O(TQ*Lk)
    # divide on the score tile.  Keeps the native dtype for the MXU.
    q = q * jnp.asarray(inv_temperature, dtype=q.dtype)

    # scores = q @ k^T (batched) without materializing a transpose:
    # contraction on the last dims feeds the MXU directly, f32 accumulation.
    s = lax.dot_general(
        q, k, (((2,), (2,)), ((0,), (0,))),
        preferred_element_type=jnp.float32)           # (TB, TQ, Lk_p) f32

    if num_valid_k is not None:
        # Key axis was padded to a lane multiple; push padded columns to a
        # very negative score so softmax ignores them (exp -> 0).
        col = lax.broadcasted_iota(jnp.int32, s.shape, dimension=2)
        s = jnp.where(col < num_valid_k, s, jnp.float32(-1e30))

    # Numerically stable softmax / log_softmax over the key axis.
    m = jnp.max(s, axis=-1, keepdims=True)
    shifted = s - m
    e = jnp.exp(shifted)
    denom = jnp.sum(e, axis=-1, keepdims=True)
    # Approximate reciprocal runs on the otherwise-idle EUP slot; the log
    # for log_attn stays on the exact path.
    attn = e * pl.reciprocal(denom, approx=True)
    log_attn = shifted - jnp.log(denom)

    # output = attn @ v; cast attn to v's dtype so bf16 models use the
    # bf16-native MXU path.
    out = lax.dot_general(
        attn.astype(v.dtype), v, (((2,), (1,)), ((0,), (0,))),
        preferred_element_type=jnp.float32)           # (TB, TQ, Dv)

    out_ref[...] = out.astype(out_ref.dtype)
    attn_ref[...] = attn.astype(attn_ref.dtype)
    logattn_ref[...] = log_attn.astype(logattn_ref.dtype)


def _choose_blocks(B, Lq, Lk, D, Dv, itemsize, budget_bytes):
    """Pick (TB, TQ) so the double-buffered per-step footprint fits the budget."""

    def step_bytes(tb, tq):
        io = itemsize * (tb * tq * D            # q tile
                         + tb * Lk * (D + Dv)   # k, v tiles
                         + tb * tq * Dv         # out tile
                         + 2 * tb * tq * Lk)    # attn, log_attn tiles
        tmp = 4 * tb * tq * Lk                  # f32 score/softmax temporaries
        return 2 * io + tmp                     # x2: double-buffered DMA windows

    # 1) Tile the query axis: largest sublane-aligned divisor of Lq that fits.
    tq = Lq
    if step_bytes(1, tq) > budget_bytes:
        cands = [d for d in range(8, Lq, 8) if Lq % d == 0]
        for d in sorted(cands, reverse=True):
            if step_bytes(1, d) <= budget_bytes:
                tq = d
                break
        else:
            tq = cands[0] if cands else Lq

    # 2) If a single batch element is tiny, pack several per grid step so the
    #    MXU sees more rows and per-step overhead is amortized.
    tb = 1
    if tq == Lq:
        for cand in range(B, 0, -1):
            if B % cand == 0 and cand * tq <= 1024 and \
                    step_bytes(cand, tq) <= budget_bytes:
                tb = cand
                break
    return tb, tq


def scaled_dot_product_attention(q, k, v, temperature, *,
                                 vmem_budget_bytes=20 * 1024 * 1024,
                                 vmem_limit_bytes=48 * 1024 * 1024):
    """q: (B, Lq, D), k: (B, Lk, D), v: (B, Lk, Dv) -> (out, attn, log_attn)."""
    B, Lq, D = q.shape
    Bk, Lk, Dk = k.shape
    Bv, Lkv, Dv = v.shape
    assert Bk == B and Bv == B and Dk == D and Lkv == Lk

    out_dtype = q.dtype
    itemsize = jnp.dtype(out_dtype).itemsize

    # Lane-dense attn/log_attn stores: pad the key axis to a multiple of 128.
    # Padded columns are masked in-kernel and sliced off below.
    Lk_p = -(-Lk // _LANE) * _LANE
    if Lk_p != Lk:
        pad = ((0, 0), (0, Lk_p - Lk), (0, 0))
        k = jnp.pad(k, pad)
        v = jnp.pad(v, pad)

    tb, tq = _choose_blocks(B, Lq, Lk_p, D, Dv, itemsize, vmem_budget_bytes)

    kernel = functools.partial(
        _sdpa_kernel,
        inv_temperature=1.0 / float(temperature),
        num_valid_k=None if Lk_p == Lk else Lk)

    out_shapes = (
        jax.ShapeDtypeStruct((B, Lq, Dv), out_dtype),
        jax.ShapeDtypeStruct((B, Lq, Lk_p), out_dtype),
        jax.ShapeDtypeStruct((B, Lq, Lk_p), out_dtype),
    )

    grid_spec = pltpu.PrefetchScalarGridSpec(
        num_scalar_prefetch=0,
        grid=(B // tb, Lq // tq),            # qi innermost: k/v stay resident
        in_specs=[
            pl.BlockSpec((tb, tq, D), lambda b, qi: (b, qi, 0)),
            pl.BlockSpec((tb, Lk_p, D), lambda b, qi: (b, 0, 0)),
            pl.BlockSpec((tb, Lk_p, Dv), lambda b, qi: (b, 0, 0)),
        ],
        out_specs=[
            pl.BlockSpec((tb, tq, Dv), lambda b, qi: (b, qi, 0)),
            pl.BlockSpec((tb, tq, Lk_p), lambda b, qi: (b, qi, 0)),
            pl.BlockSpec((tb, tq, Lk_p), lambda b, qi: (b, qi, 0)),
        ],
    )

    out, attn, log_attn = pl.pallas_call(
        kernel,
        out_shape=out_shapes,
        grid_spec=grid_spec,
        compiler_params=pltpu.CompilerParams(
            dimension_semantics=("parallel", "parallel"),
            vmem_limit_bytes=vmem_limit_bytes),
    )(q, k, v)

    if Lk_p != Lk:
        attn = attn[:, :, :Lk]
        log_attn = log_attn[:, :, :Lk]
    return out, attn, log_attn


def _reference(q, k, v, temperature):
    attn = jnp.einsum("bqd,bkd->bqk", q, k) / temperature
    log_attn = jax.nn.log_softmax(attn, axis=2)
    attn = jax.nn.softmax(attn, axis=2)
    out = jnp.einsum("bqk,bkd->bqd", attn, v)
    return out, attn, log_attn


if __name__ == "__main__":
    key = jax.random.PRNGKey(0)
    kq, kk, kv = jax.random.split(key, 3)

    B, Lq, Lk, D, Dv = 2, 8, 8, 32, 32
    temperature = float(D) ** 0.5  # standard 1/sqrt(d_k) scaling

    q = jax.random.normal(kq, (B, Lq, D), dtype=jnp.float32)
    k = jax.random.normal(kk, (B, Lk, D), dtype=jnp.float32)
    v = jax.random.normal(kv, (B, Lk, Dv), dtype=jnp.float32)

    out, attn, log_attn = scaled_dot_product_attention(q, k, v, temperature)
    jax.block_until_ready((out, attn, log_attn))

    # Correctness check against a pure-JAX reference.  Tolerances on
    # attn/out are loosened because of the EUP approximate reciprocal;
    # log_attn uses the exact log path and stays tight.
    ref_out, ref_attn, ref_log_attn = _reference(q, k, v, temperature)
    assert out.shape == (B, Lq, Dv)
    assert attn.shape == (B, Lq, Lk) and log_attn.shape == (B, Lq, Lk)
    assert jnp.allclose(attn, ref_attn, atol=1e-2, rtol=1e-2)
    assert jnp.allclose(out, ref_out, atol=1e-2, rtol=1e-2)
    assert jnp.allclose(log_attn, ref_log_attn, atol=1e-4, rtol=1e-4)

    print("KERNEL_OK")
</pallas_src>

<mosaic_0001>
module attributes {stable_mosaic.version = 11 : i64} {
  func.func @_sdpa_kernel(%arg0: i32, %arg1: i32, %arg2: memref<2x8x32xf32, #tpu.memory_space<vmem>>, %arg3: memref<2x128x32xf32, #tpu.memory_space<vmem>>, %arg4: memref<2x128x32xf32, #tpu.memory_space<vmem>>, %arg5: memref<2x8x32xf32, #tpu.memory_space<vmem>>, %arg6: memref<2x8x128xf32, #tpu.memory_space<vmem>>, %arg7: memref<2x8x128xf32, #tpu.memory_space<vmem>>) attributes {dimension_semantics = [#tpu.dimension_semantics<parallel>, #tpu.dimension_semantics<parallel>], iteration_bounds = array<i64: 1, 1>, scalar_prefetch = 0 : i64, scratch_operands = 0 : i64, tpu.core_type = #tpu.core_type<tc>, window_params = [{transform_indices = @transform_0, window_bounds = array<i64: 2, 8, 32>}, {transform_indices = @transform_1, window_bounds = array<i64: 2, 128, 32>}, {transform_indices = @transform_2, window_bounds = array<i64: 2, 128, 32>}, {transform_indices = @transform_3, window_bounds = array<i64: 2, 8, 32>}, {transform_indices = @transform_4, window_bounds = array<i64: 2, 8, 128>}, {transform_indices = @transform_5, window_bounds = array<i64: 2, 8, 128>}]} {
    %c0 = arith.constant 0 : index
    %c0_0 = arith.constant 0 : index
    %c0_1 = arith.constant 0 : index
    %0 = vector.load %arg2[%c0, %c0_0, %c0_1] : memref<2x8x32xf32, #tpu.memory_space<vmem>>, vector<2x8x32xf32>
    %c0_2 = arith.constant 0 : index
    %c0_3 = arith.constant 0 : index
    %c0_4 = arith.constant 0 : index
    %1 = vector.load %arg3[%c0_2, %c0_3, %c0_4] : memref<2x128x32xf32, #tpu.memory_space<vmem>>, vector<2x128x32xf32>
    %c0_5 = arith.constant 0 : index
    %c0_6 = arith.constant 0 : index
    %c0_7 = arith.constant 0 : index
    %2 = vector.load %arg4[%c0_5, %c0_6, %c0_7] : memref<2x128x32xf32, #tpu.memory_space<vmem>>, vector<2x128x32xf32>
    %cst = arith.constant 0.176776692 : f32
    %3 = vector.broadcast %cst : f32 to vector<2x8x32xf32>
    %4 = arith.mulf %0, %3 : vector<2x8x32xf32>
    %cst_8 = arith.constant dense<0.000000e+00> : vector<2x8x128xf32>
    %5 = tpu.matmul %4, %1, %cst_8 {dimension_numbers = #tpu.dot_dimension_numbers<[2], [2], [1], [1], [0, 0, 0, 1, 1, 1], [0], [0]>} : vector<2x8x32xf32>, vector<2x128x32xf32>, vector<2x8x128xf32> -> vector<2x8x128xf32>
    %6 = tpu.iota {dimensions = array<i32: 2>} : vector<2x8x128xi32>
    %c8_i32 = arith.constant 8 : i32
    %7 = vector.broadcast %c8_i32 : i32 to vector<2x8x128xi32>
    %8 = arith.cmpi slt, %6, %7 : vector<2x8x128xi32>
    %cst_9 = arith.constant -1.000000e+30 : f32
    %9 = vector.broadcast %cst_9 : f32 to vector<2x8x128xf32>
    %10 = arith.select %8, %5, %9 : vector<2x8x128xi1>, vector<2x8x128xf32>
    %cst_10 = arith.constant dense<0xFF800000> : vector<2x8xf32>
    %11 = vector.multi_reduction <maximumf>, %10, %cst_10 [2] : vector<2x8x128xf32> to vector<2x8xf32>
    %12 = vector.shape_cast %11 : vector<2x8xf32> to vector<2x8x1xf32>
    %13 = vector.broadcast %12 : vector<2x8x1xf32> to vector<2x8x128xf32>
    %14 = arith.subf %10, %13 : vector<2x8x128xf32>
    %15 = math.exp %14 : vector<2x8x128xf32>
    %cst_11 = arith.constant dense<0.000000e+00> : vector<2x8xf32>
    %16 = vector.multi_reduction <add>, %15, %cst_11 [2] : vector<2x8x128xf32> to vector<2x8xf32>
    %17 = vector.shape_cast %16 : vector<2x8xf32> to vector<2x8x1xf32>
    %18 = tpu.reciprocal %17 {approx = true} : vector<2x8x1xf32> -> vector<2x8x1xf32>
    %19 = vector.broadcast %18 : vector<2x8x1xf32> to vector<2x8x128xf32>
    %20 = arith.mulf %15, %19 : vector<2x8x128xf32>
    %21 = math.log %17 : vector<2x8x1xf32>
    %22 = vector.broadcast %21 : vector<2x8x1xf32> to vector<2x8x128xf32>
    %23 = arith.subf %14, %22 : vector<2x8x128xf32>
    %cst_12 = arith.constant dense<0.000000e+00> : vector<2x8x32xf32>
    %24 = tpu.matmul %20, %2, %cst_12 {dimension_numbers = #tpu.dot_dimension_numbers<[2], [1], [1], [2], [0, 0, 0, 1, 1, 2], [0], [0]>} : vector<2x8x128xf32>, vector<2x128x32xf32>, vector<2x8x32xf32> -> vector<2x8x32xf32>
    %c0_13 = arith.constant 0 : index
    %c0_14 = arith.constant 0 : index
    %c0_15 = arith.constant 0 : index
    %25 = vector.load %arg5[%c0_13, %c0_14, %c0_15] : memref<2x8x32xf32, #tpu.memory_space<vmem>>, vector<2x8x32xf32>
    tpu.vector_store %arg5[%c0_13, %c0_14, %c0_15], %24 {strides = array<i32>} : memref<2x8x32xf32, #tpu.memory_space<vmem>>, vector<2x8x32xf32>,
    %c0_16 = arith.constant 0 : index
    %c0_17 = arith.constant 0 : index
    %c0_18 = arith.constant 0 : index
    %26 = vector.load %arg6[%c0_16, %c0_17, %c0_18] : memref<2x8x128xf32, #tpu.memory_space<vmem>>, vector<2x8x128xf32>
    tpu.vector_store %arg6[%c0_16, %c0_17, %c0_18], %20 {strides = array<i32>} : memref<2x8x128xf32, #tpu.memory_space<vmem>>, vector<2x8x128xf32>,
    %c0_19 = arith.constant 0 : index
    %c0_20 = arith.constant 0 : index
    %c0_21 = arith.constant 0 : index
    %27 = vector.load %arg7[%c0_19, %c0_20, %c0_21] : memref<2x8x128xf32, #tpu.memory_space<vmem>>, vector<2x8x128xf32>
    tpu.vector_store %arg7[%c0_19, %c0_20, %c0_21], %23 {strides = array<i32>} : memref<2x8x128xf32, #tpu.memory_space<vmem>>, vector<2x8x128xf32>,
    return
  }
  func.func @transform_0(%arg0: i32, %arg1: i32) -> (i32, i32, i32) {
    %c0_i32 = arith.constant 0 : i32
    %c0_i32_0 = arith.constant 0 : i32
    return %arg0, %arg1, %c0_i32 : i32, i32, i32
  }
  func.func @transform_1(%arg0: i32, %arg1: i32) -> (i32, i32, i32) {
    %c0_i32 = arith.constant 0 : i32
    %c0_i32_0 = arith.constant 0 : i32
    %c0_i32_1 = arith.constant 0 : i32
    return %arg0, %c0_i32, %c0_i32_0 : i32, i32, i32
  }
  func.func @transform_2(%arg0: i32, %arg1: i32) -> (i32, i32, i32) {
    %c0_i32 = arith.constant 0 : i32
    %c0_i32_0 = arith.constant 0 : i32
    %c0_i32_1 = arith.constant 0 : i32
    return %arg0, %c0_i32, %c0_i32_0 : i32, i32, i32
  }
  func.func @transform_3(%arg0: i32, %arg1: i32) -> (i32, i32, i32) {
    %c0_i32 = arith.constant 0 : i32
    %c0_i32_0 = arith.constant 0 : i32
    return %arg0, %arg1, %c0_i32 : i32, i32, i32
  }
  func.func @transform_4(%arg0: i32, %arg1: i32) -> (i32, i32, i32) {
    %c0_i32 = arith.constant 0 : i32
    %c0_i32_0 = arith.constant 0 : i32
    return %arg0, %arg1, %c0_i32 : i32, i32, i32
  }
  func.func @transform_5(%arg0: i32, %arg1: i32) -> (i32, i32, i32) {
    %c0_i32 = arith.constant 0 : i32
    %c0_i32_0 = arith.constant 0 : i32
    return %arg0, %arg1, %c0_i32 : i32, i32, i32
  }
}

</mosaic_0001>

<llo_original>
// kernel: tpu_custom_call.1
$region0: #{tpu_custom_call.1}
  #allocation0 [shape = 'u32[]', space=smem, size = 0x4, offset = 0x4, fixed_abs, tag = 'smem constant byte address 0x4 - core index']
  #allocation1 [shape = 'u32[72,128]{1,0:T(1,128)}', space=vmem, size = 0x9000, scoped, tag = 'internal scratch']
  %s0 = inlined_call_operand.vmem [shape: f32[2,8,32], index: 0, kind: input, shape index: {}]
  %s1 = inlined_call_operand.vmem [shape: f32[2,128,32], index: 1, kind: input, shape index: {}]
  %s2 = inlined_call_operand.vmem [shape: f32[2,128,32], index: 2, kind: input, shape index: {}]
  %s3 = inlined_call_operand.hbm [shape: f32[2,8,32], index: 3, kind: output, shape index: {0}]
  %s4 = inlined_call_operand.hbm [shape: f32[2,8,128], index: 4, kind: output, shape index: {1}]
  %s5 = inlined_call_operand.hbm [shape: f32[2,8,128], index: 5, kind: output, shape index: {2}]
  %6 = xla_tuple %s3, %s4, %s5
  %s7 = sld [smem:[#allocation0]]
  $region38: #{tpu_custom_call.1} parent=0
    _
  %s9 = ssub.s32 1, %s7
  %s10 = scalar_select 0, %s9, %s7
  $region1: #{tpu_custom_call.1} parent=0
    #allocation2 [shape = 'u8[8192]{0}', space=vmem, size = 0x2000, scoped, tag = 'output window, operand 0, single buffered']
    #allocation3 [shape = 's32[1]{0}', space=sflag, size = 0x4, scoped, tag = 'scoped memory for tpu_custom_call.1']
    #allocation4 [shape = 'u8[8192]{0}', space=vmem, size = 0x2000, scoped, tag = 'output window, operand 1, single buffered']
    #allocation5 [shape = 's32[1]{0}', space=sflag, size = 0x4, scoped, tag = 'scoped memory for tpu_custom_call.1']
    #allocation6 [shape = 'u8[8192]{0}', space=vmem, size = 0x2000, scoped, tag = 'output window, operand 2, single buffered']
    %11 = vsyncpa [#allocation3], 0
    %12 = vsyncpa [#allocation5], 0
    // Predicated region
    $region2: #{tpu_custom_call.1} parent=1 // pred_check
      _
    $region3: #{tpu_custom_call.1} parent=1 // pred_check_branch
      %14 = sbr.rel (0) target = $region5
    $region4: #{tpu_custom_call.1} parent=1 // pred_region
      _
    $region5: #{tpu_custom_call.1} parent=1 // pred_fallthru
      _
    // Predicated region
    $region6: #{tpu_custom_call.1} parent=1 // pred_check
      _
    $region7: #{tpu_custom_call.1} parent=1 // pred_check_branch
      %16 = sbr.rel (0) target = $region9
    $region8: #{tpu_custom_call.1} parent=1 // pred_region
      _
    $region9: #{tpu_custom_call.1} parent=1 // pred_fallthru
      _
    // Predicated region
    $region10: #{tpu_custom_call.1} parent=1 // pred_check
      _
    $region11: #{tpu_custom_call.1} parent=1 // pred_check_branch
      %18 = sbr.rel (0) target = $region13
    $region12: #{tpu_custom_call.1} parent=1 // pred_region
      _
    $region13: #{tpu_custom_call.1} parent=1 // pred_fallthru
      _
    %v19 = vld [vmem:[%s0] sm:$0xff]
    %v20 = vld [vmem:[%s0 + $0x8] sm:$0xff]
    %v21 = vld [vmem:[%s1] sm:$0xff]
    %v22 = vld [vmem:[%s1 + $0x8] sm:$0xff]
    %v23 = vld [vmem:[%s1 + $0x10] sm:$0xff]
    %v24 = vld [vmem:[%s1 + $0x18] sm:$0xff]
    %v25 = vld [vmem:[%s1 + $0x20] sm:$0xff]
    %v26 = vld [vmem:[%s1 + $0x28] sm:$0xff]
    %v27 = vld [vmem:[%s1 + $0x30] sm:$0xff]
    %v28 = vld [vmem:[%s1 + $0x38] sm:$0xff]
    %v29 = vld [vmem:[%s1 + $0x40] sm:$0xff]
    %v30 = vld [vmem:[%s1 + $0x48] sm:$0xff]
    %v31 = vld [vmem:[%s1 + $0x50] sm:$0xff]
    %v32 = vld [vmem:[%s1 + $0x58] sm:$0xff]
    %v33 = vld [vmem:[%s1 + $0x60] sm:$0xff]
    %v34 = vld [vmem:[%s1 + $0x68] sm:$0xff]
    %v35 = vld [vmem:[%s1 + $0x70] sm:$0xff]
    %v36 = vld [vmem:[%s1 + $0x78] sm:$0xff]
    %v37 = vld [vmem:[%s1 + $0x80] sm:$0xff]
    %v38 = vld [vmem:[%s1 + $0x88] sm:$0xff]
    %v39 = vld [vmem:[%s1 + $0x90] sm:$0xff]
    %v40 = vld [vmem:[%s1 + $0x98] sm:$0xff]
    %v41 = vld [vmem:[%s1 + $0xa0] sm:$0xff]
    %v42 = vld [vmem:[%s1 + $0xa8] sm:$0xff]
    %v43 = vld [vmem:[%s1 + $0xb0] sm:$0xff]
    %v44 = vld [vmem:[%s1 + $0xb8] sm:$0xff]
    %v45 = vld [vmem:[%s1 + $0xc0] sm:$0xff]
    %v46 = vld [vmem:[%s1 + $0xc8] sm:$0xff]
    %v47 = vld [vmem:[%s1 + $0xd0] sm:$0xff]
    %v48 = vld [vmem:[%s1 + $0xd8] sm:$0xff]
    %v49 = vld [vmem:[%s1 + $0xe0] sm:$0xff]
    %v50 = vld [vmem:[%s1 + $0xe8] sm:$0xff]
    %v51 = vld [vmem:[%s1 + $0xf0] sm:$0xff]
    %v52 = vld [vmem:[%s1 + $0xf8] sm:$0xff]
    %v53 = vld [vmem:[%s2] sm:$0xff]
    %v54 = vld [vmem:[%s2 + $0x8] sm:$0xff]
    %v55 = vld [vmem:[%s2 + $0x10] sm:$0xff]
    %v56 = vld [vmem:[%s2 + $0x18] sm:$0xff]
    %v57 = vld [vmem:[%s2 + $0x20] sm:$0xff]
    %v58 = vld [vmem:[%s2 + $0x28] sm:$0xff]
    %v59 = vld [vmem:[%s2 + $0x30] sm:$0xff]
    %v60 = vld [vmem:[%s2 + $0x38] sm:$0xff]
    %v61 = vld [vmem:[%s2 + $0x40] sm:$0xff]
    %v62 = vld [vmem:[%s2 + $0x48] sm:$0xff]
    %v63 = vld [vmem:[%s2 + $0x50] sm:$0xff]
    %v64 = vld [vmem:[%s2 + $0x58] sm:$0xff]
    %v65 = vld [vmem:[%s2 + $0x60] sm:$0xff]
    %v66 = vld [vmem:[%s2 + $0x68] sm:$0xff]
    %v67 = vld [vmem:[%s2 + $0x70] sm:$0xff]
    %v68 = vld [vmem:[%s2 + $0x78] sm:$0xff]
    %v69 = vld [vmem:[%s2 + $0x80] sm:$0xff]
    %v70 = vld [vmem:[%s2 + $0x88] sm:$0xff]
    %v71 = vld [vmem:[%s2 + $0x90] sm:$0xff]
    %v72 = vld [vmem:[%s2 + $0x98] sm:$0xff]
    %v73 = vld [vmem:[%s2 + $0xa0] sm:$0xff]
    %v74 = vld [vmem:[%s2 + $0xa8] sm:$0xff]
    %v75 = vld [vmem:[%s2 + $0xb0] sm:$0xff]
    %v76 = vld [vmem:[%s2 + $0xb8] sm:$0xff]
    %v77 = vld [vmem:[%s2 + $0xc0] sm:$0xff]
    %v78 = vld [vmem:[%s2 + $0xc8] sm:$0xff]
    %v79 = vld [vmem:[%s2 + $0xd0] sm:$0xff]
    %v80 = vld [vmem:[%s2 + $0xd8] sm:$0xff]
    %v81 = vld [vmem:[%s2 + $0xe0] sm:$0xff]
    %v82 = vld [vmem:[%s2 + $0xe8] sm:$0xff]
    %v83 = vld [vmem:[%s2 + $0xf0] sm:$0xff]
    %v84 = vld [vmem:[%s2 + $0xf8] sm:$0xff]
    %v85 = vmul.f32 %v19, 0.17677669
    %v86 = vmul.f32 %v20, 0.17677669
    %vm87 = vcmask 261120
    %v89 = vsel %vm87, %v85, 0
    %v92 = vsel %vm87, %v21, 0
    %v95 = vsel %vm87, %v22, 0
    %v98 = vsel %vm87, %v23, 0
    %v101 = vsel %vm87, %v24, 0
    %v104 = vsel %vm87, %v25, 0
    %v107 = vsel %vm87, %v26, 0
    %v110 = vsel %vm87, %v27, 0
    %v113 = vsel %vm87, %v28, 0
    %v116 = vsel %vm87, %v29, 0
    %v119 = vsel %vm87, %v30, 0
    %v122 = vsel %vm87, %v31, 0
    %v125 = vsel %vm87, %v32, 0
    %v128 = vsel %vm87, %v33, 0
    %v131 = vsel %vm87, %v34, 0
    %v134 = vsel %vm87, %v35, 0
    %v137 = vsel %vm87, %v36, 0
    %139 = vmatpush.xpose.msra.mxu0 %v137
    %140 = vmatpush.xpose.msra.mxu0 %v134
    %141 = vmatpush.xpose.msra.mxu0 %v131
    %142 = vmatpush.xpose.msra.mxu0 %v128
    %143 = vmatpush.xpose.msra.mxu0 %v125
    %144 = vmatpush.xpose.msra.mxu0 %v122
    %145 = vmatpush.xpose.msra.mxu0 %v119
    %146 = vmatpush.xpose.msra.mxu0 %v116
    %147 = vmatpush.xpose.msra.mxu0 %v113
    %148 = vmatpush.xpose.msra.mxu0 %v110
    %149 = vmatpush.xpose.msra.mxu0 %v107
    %150 = vmatpush.xpose.msra.mxu0 %v104
    %151 = vmatpush.xpose.msra.mxu0 %v101
    %152 = vmatpush.xpose.msra.mxu0 %v98
    %153 = vmatpush.xpose.msra.mxu0 %v95
    %154 = vmatpush.xpose.msra.mxu0 %v92
    %155 = vmatmul.f32.gmra.mxu0 %v89
    %v156 = vpop.f32.mrf.mxu0
    %v157 = vadd.f32 0.0, %v156
    %158 = vdwg.mxu0
    %v160 = vsel %vm87, %v86, 0
    %v163 = vsel %vm87, %v37, 0
    %v166 = vsel %vm87, %v38, 0
    %v169 = vsel %vm87, %v39, 0
    %v172 = vsel %vm87, %v40, 0
    %v175 = vsel %vm87, %v41, 0
    %v178 = vsel %vm87, %v42, 0
    %v181 = vsel %vm87, %v43, 0
    %v184 = vsel %vm87, %v44, 0
    %v187 = vsel %vm87, %v45, 0
    %v190 = vsel %vm87, %v46, 0
    %v193 = vsel %vm87, %v47, 0
    %v196 = vsel %vm87, %v48, 0
    %v199 = vsel %vm87, %v49, 0
    %v202 = vsel %vm87, %v50, 0
    %v205 = vsel %vm87, %v51, 0
    %v208 = vsel %vm87, %v52, 0
    %210 = vmatpush.xpose.msra.mxu0 %v208
    %211 = vmatpush.xpose.msra.mxu0 %v205
    %212 = vmatpush.xpose.msra.mxu0 %v202
    %213 = vmatpush.xpose.msra.mxu0 %v199
    %214 = vmatpush.xpose.msra.mxu0 %v196
    %215 = vmatpush.xpose.msra.mxu0 %v193
    %216 = vmatpush.xpose.msra.mxu0 %v190
    %217 = vmatpush.xpose.msra.mxu0 %v187
    %218 = vmatpush.xpose.msra.mxu0 %v184
    %219 = vmatpush.xpose.msra.mxu0 %v181
    %220 = vmatpush.xpose.msra.mxu0 %v178
    %221 = vmatpush.xpose.msra.mxu0 %v175
    %222 = vmatpush.xpose.msra.mxu0 %v172
    %223 = vmatpush.xpose.msra.mxu0 %v169
    %224 = vmatpush.xpose.msra.mxu0 %v166
    %225 = vmatpush.xpose.msra.mxu0 %v163
    %226 = vmatmul.f32.gmra.mxu0 %v160
    %v227 = vpop.f32.mrf.mxu0
    %v228 = vadd.f32 0.0, %v227
    %229 = vdwg.mxu0
    %v230 = vlaneseq
    %v231 = vand.u32 %v230, 127
    %vm232 = vcmp.lt.s32.totalorder %v231, 8
    %v233 = vsel %vm232, %v157, -1e+30
    %v234 = vsel %vm232, %v228, -1e+30
    %235 = vmax.xlane.f32.xlu0 %v233
    %v236 = vpop.xlane.xlu0 %235
    %237 = vmax.xlane.f32.xlu0 %v234
    %v238 = vpop.xlane.xlu0 %237
    %v239 = vsub.f32 %v233, %v236
    %v240 = vsub.f32 %v234, %v238
    %v241 = vmul.f32 %v239, 1.442695
    %v242 = vpow.pop %v241
    %v243 = vmul.f32 %v240, 1.442695
    %v244 = vpow.pop %v243
    %245 = vadd.xlane.f32.xlu0 %v242
    %v246 = vpop.xlane.xlu0 %245
    %247 = vadd.xlane.f32.xlu0 %v244
    %v248 = vpop.xlane.xlu0 %247
    %v249 = vrcp.pop %v246
    %v250 = vrcp.pop %v248
    %v251 = vmul.f32 %v242, %v249
    %v252 = vmul.f32 %v244, %v250
    %v253 = vlog2.pop %v246
    %v254 = vmul.f32 %v253, 0.6931472
    %v255 = vlog2.pop %v248
    %v256 = vmul.f32 %v255, 0.6931472
    %v257 = vsub.f32 %v239, %v254
    %v258 = vsub.f32 %v240, %v256
    %259 = vmatpush.msra.mxu0 %v68
    %260 = vmatpush.msra.mxu0 %v67
    %261 = vmatpush.msra.mxu0 %v66
    %262 = vmatpush.msra.mxu0 %v65
    %263 = vmatpush.msra.mxu0 %v64
    %264 = vmatpush.msra.mxu0 %v63
    %265 = vmatpush.msra.mxu0 %v62
    %266 = vmatpush.msra.mxu0 %v61
    %267 = vmatpush.msra.mxu0 %v60
    %268 = vmatpush.msra.mxu0 %v59
    %269 = vmatpush.msra.mxu0 %v58
    %270 = vmatpush.msra.mxu0 %v57
    %271 = vmatpush.msra.mxu0 %v56
    %272 = vmatpush.msra.mxu0 %v55
    %273 = vmatpush.msra.mxu0 %v54
    %274 = vmatpush.msra.mxu0 %v53
    %275 = vmatmul.f32.gmra.mxu0 %v251
    %v276 = vpop.f32.mrf.mxu0
    %v277 = vadd.f32 0.0, %v276
    %278 = vdwg.mxu0
    %279 = vmatpush.msra.mxu0 %v84
    %280 = vmatpush.msra.mxu0 %v83
    %281 = vmatpush.msra.mxu0 %v82
    %282 = vmatpush.msra.mxu0 %v81
    %283 = vmatpush.msra.mxu0 %v80
    %284 = vmatpush.msra.mxu0 %v79
    %285 = vmatpush.msra.mxu0 %v78
    %286 = vmatpush.msra.mxu0 %v77
    %287 = vmatpush.msra.mxu0 %v76
    %288 = vmatpush.msra.mxu0 %v75
    %289 = vmatpush.msra.mxu0 %v74
    %290 = vmatpush.msra.mxu0 %v73
    %291 = vmatpush.msra.mxu0 %v72
    %292 = vmatpush.msra.mxu0 %v71
    %293 = vmatpush.msra.mxu0 %v70
    %294 = vmatpush.msra.mxu0 %v69
    %295 = vmatmul.f32.gmra.mxu0 %v252
    %v296 = vpop.f32.mrf.mxu0
    %v297 = vadd.f32 0.0, %v296
    %298 = vdwg.mxu0
    %299 = vst.msk [vmem:[#allocation2] sm:$0xff] %vm87, %v277
    %300 = vst.msk [vmem:[#allocation2 + $0x8] sm:$0xff] %vm87, %v297
    %301 = vst [vmem:[#allocation4] sm:$0xff] %v251
    %302 = vst [vmem:[#allocation4 + $0x8] sm:$0xff] %v252
    %303 = vst [vmem:[#allocation6] sm:$0xff] %v257
    %304 = vst [vmem:[#allocation6 + $0x8] sm:$0xff] %v258
    // Predicated region
    $region14: #{tpu_custom_call.1} parent=1 // pred_check
      _
    $region15: #{tpu_custom_call.1} parent=1 // pred_check_branch
      %306 = sbr.rel (0) target = $region17
    $region16: #{tpu_custom_call.1} parent=1 // pred_region
      %308 = vsyncadd [#allocation3], 0
      %s309 = sshll.u32 [#allocation2], 4
      %s310 = int_to_ptr.vmem [resolvable:$true] %s309
      %s311 = sshll.u32 %s3, 4
      %s312 = int_to_ptr.hbm [resolvable:$true] %s311
      %317 = dma.vmem_to_hbm [thread:$0]  %s310, 256, %s312, [#allocation3], 128, 128, 8
    $region17: #{tpu_custom_call.1} parent=1 // pred_fallthru
      _
    // Predicated region
    $region18: #{tpu_custom_call.1} parent=1 // pred_check
      _
    $region19: #{tpu_custom_call.1} parent=1 // pred_check_branch
      %319 = sbr.rel (0) target = $region21
    $region20: #{tpu_custom_call.1} parent=1 // pred_region
      %321 = vsyncadd [#allocation5], 0
      %s322 = sshll.u32 [#allocation4], 4
      %s323 = int_to_ptr.vmem [resolvable:$true] %s322
      %s324 = sshll.u32 %s4, 4
      %s325 = int_to_ptr.hbm [resolvable:$true] %s324
      %330 = dma.vmem_to_hbm [thread:$0]  %s323, 256, %s325, [#allocation5], 128, 128, 8
    $region21: #{tpu_custom_call.1} parent=1 // pred_fallthru
      _
    // Predicated region
    $region22: #{tpu_custom_call.1} parent=1 // pred_check
      _
    $region23: #{tpu_custom_call.1} parent=1 // pred_check_branch
      %332 = sbr.rel (0) target = $region25
    $region24: #{tpu_custom_call.1} parent=1 // pred_region
      %334 = vsyncadd [#allocation5], 0
      %s335 = sshll.u32 [#allocation6], 4
      %s336 = int_to_ptr.vmem [resolvable:$true] %s335
      %s337 = sshll.u32 %s5, 4
      %s338 = int_to_ptr.hbm [resolvable:$true] %s337
      %343 = dma.vmem_to_hbm [thread:$0]  %s336, 256, %s338, [#allocation5], 128, 128, 8
    $region25: #{tpu_custom_call.1} parent=1 // pred_fallthru
      _
    // Predicated region
    $region26: #{tpu_custom_call.1} parent=1 // pred_check
      _
    $region27: #{tpu_custom_call.1} parent=1 // pred_check_branch
      %345 = sbr.rel (0) target = $region29
    $region28: #{tpu_custom_call.1} parent=1 // pred_region
      %347 = dma.done [#allocation3], 256
    $region29: #{tpu_custom_call.1} parent=1 // pred_fallthru
      _
    // Predicated region
    $region30: #{tpu_custom_call.1} parent=1 // pred_check
      _
    $region31: #{tpu_custom_call.1} parent=1 // pred_check_branch
      %349 = sbr.rel (0) target = $region33
    $region32: #{tpu_custom_call.1} parent=1 // pred_region
      %351 = dma.done [#allocation5], 256
    $region33: #{tpu_custom_call.1} parent=1 // pred_fallthru
      _
    // Predicated region
    $region34: #{tpu_custom_call.1} parent=1 // pred_check
      _
    $region35: #{tpu_custom_call.1} parent=1 // pred_check_branch
      %353 = sbr.rel (0) target = $region37
    $region36: #{tpu_custom_call.1} parent=1 // pred_region
      %355 = dma.done [#allocation5], 256
    $region37: #{tpu_custom_call.1} parent=1 // pred_fallthru
      _
    %356 = vsyncpa [#allocation3], 1
    %357 = vsyncpa [#allocation5], 1

</llo_original>
